<compile_context>
chip_gen: v5e
topology: v5e:2x2
jax: 0.10.0
libtpu: 0.0.40
codegen_flags: <defaults>
</compile_context>

<pallas_src>
import functools

import jax
import jax.numpy as jnp
import numpy as np
from jax.experimental import pallas as pl
from jax.experimental.pallas import tpu as pltpu


def _hint_multiple(x, m):
    # pl.multiple_of is a hint for dynamic values; plain Python ints pass through.
    return x if isinstance(x, int) else pl.multiple_of(x, m)


def semantic_alignment_kernel(phr_ref, vis_ref, wt_ref, ut_ref, b_ref, w_ref,
                              al_ref, wts_ref, en_ref, *, p_chunk, tanh_dtype):
    Bt, P, Q = phr_ref.shape
    _, V, F = vis_ref.shape
    K = wt_ref.shape[1]

    vis = vis_ref[...]                                   # (Bt, V, F), reused by every chunk
    wt = wt_ref[...]                                     # (Q, K)

    # Visual bottleneck projection with the bias folded in once: one MXU matmul
    # with M = Bt*V, and no (P, V, K) broadcast-add pass in the energies stage.
    uvb = (jnp.dot(vis.reshape(Bt * V, F), ut_ref[...],
                   preferred_element_type=jnp.float32)
           + b_ref[...]).reshape(Bt, V, K)

    # Hoisted broadcast operands (JAX does not CSE broadcast_in_dim, so these must
    # not be re-materialized per chunk). w stays 2-D coming in (no 1-D layouts).
    uvb_c = uvb.astype(tanh_dtype)[:, None, :, :]        # (Bt, 1, V, K)
    w_b = w_ref[...].reshape(1, 1, 1, K)                 # (1, 1, 1, K) f32

    n_chunks = P // p_chunk

    def chunk_body(c, carry):
        # Chunk over P so the (Bt, Pc, V, K) tanh intermediate plus the softmax
        # state stays register-resident; liveness is bounded by the visible loop.
        p0 = _hint_multiple(c * p_chunk, p_chunk)
        phr_c = phr_ref[:, pl.ds(p0, p_chunk), :]        # (Bt, Pc, Q)

        wh_c = jnp.dot(phr_c.reshape(Bt * p_chunk, Q), wt,
                       preferred_element_type=jnp.float32
                       ).reshape(Bt, p_chunk, K)

        # bf16 broadcast-add + tanh on v6e/v7x (2x packed EUP/VPU, half the live
        # state); f32 on v5e. Upcast for the K-reduction and the softmax.
        t = jnp.tanh(wh_c.astype(tanh_dtype)[:, :, None, :] + uvb_c)   # (Bt, Pc, V, K)
        energies = jnp.sum(t.astype(jnp.float32) * w_b, axis=-1)       # (Bt, Pc, V)
        # TODO(synk): if profiles show this K-reduce binding post-bf16, push it to
        # the idle MXU as a (Bt*Pc*V, K) @ (K, 1) matmul instead of the lane reduce.

        # Numerically stable softmax over V; normalization uses the EUP reciprocal
        # slot instead of a VALU divide.
        m = jnp.max(energies, axis=-1, keepdims=True)
        e = jnp.exp(energies - m)
        inv = pl.reciprocal(jnp.sum(e, axis=-1, keepdims=True), approx=True)
        weights = e * inv                                               # (Bt, Pc, V)

        aligned = jnp.einsum("bpv,bvf->bpf", weights, vis,
                             preferred_element_type=jnp.float32)        # (Bt, Pc, F)

        # Lane-dense stores: flatten (Pc,V)/(Pc,F) onto the 128-lane axis so the
        # output stores are full-lane vst instead of masked partial stores.
        ev = _hint_multiple(p0 * V, p_chunk * V)
        ea = _hint_multiple(p0 * F, p_chunk * F)
        en_ref[:, :, pl.ds(ev, p_chunk * V)] = energies.reshape(Bt, 1, p_chunk * V)
        wts_ref[:, :, pl.ds(ev, p_chunk * V)] = weights.reshape(Bt, 1, p_chunk * V)
        al_ref[:, :, pl.ds(ea, p_chunk * F)] = aligned.reshape(
            Bt, 1, p_chunk * F).astype(al_ref.dtype)
        return carry

    if n_chunks == 1:
        chunk_body(0, 0)                      # fully static path, no loop machinery
    else:
        jax.lax.fori_loop(0, n_chunks, chunk_body, 0, unroll=True)


def _largest_divisor_leq(n, cap):
    cap = max(1, min(cap, n))
    for d in range(cap, 0, -1):
        if n % d == 0:
            return d
    return 1


def _padded_tile_bytes(shape, dtype_bytes=4):
    """VMEM footprint of one buffer: last dim pads to 128 lanes, 2nd-last to 8 sublanes."""
    s = [int(d) for d in shape]
    s[-1] = -(-s[-1] // 128) * 128
    if len(s) >= 2:
        s[-2] = -(-s[-2] // 8) * 8
    n = 1
    for d in s:
        n *= d
    return n * dtype_bytes


def _vmem_capacity_bytes():
    try:
        cap = getattr(pltpu.get_tpu_info(), "vmem_capacity_bytes", None)
        if cap:
            return int(cap)
    except Exception:
        pass
    return 64 * 1024 * 1024     # conservative fallback: v7x per-TensorCore VMEM


def _use_bf16_tanh():
    # bf16 EUP/VPU exists on v6e / v7x; v5e (and older) keep the tanh in f32.
    try:
        kind = jax.devices()[0].device_kind.lower()
    except Exception:
        return False
    return any(tag in kind for tag in ("v6", "v7", "7x"))


def semantic_alignment(phr_feats, vis_feats, W, U, b, w, block_b=None):
    """W: (K, Q), U: (K, F), b: (K,), w: (K,) -- PyTorch Linear weight layouts."""
    B, P, Q = phr_feats.shape
    _, V, F = vis_feats.shape
    K = b.shape[0]

    tanh_dtype = jnp.bfloat16 if _use_bf16_tanh() else jnp.float32

    def p_chunk_for(bb):
        # Bound live f32 tanh state to ~8K elements (32 KiB) -- well under the
        # 256 KiB vreg file so Wh/Uvb/softmax state stays register-resident.
        max_live = 8 * 1024
        pc = P
        while pc > 1 and bb * pc * V * K > max_live:
            pc -= 1
            while pc > 1 and P % pc:
                pc -= 1
        return max(pc, 1)

    def block_vmem_bytes(bb):
        pc = p_chunk_for(bb)
        t = _padded_tile_bytes
        # Double-buffered pipeline blocks (inputs and outputs), padded layouts.
        pipeline = 2 * (t((bb, P, Q)) + t((bb, V, F))
                        + t((Q, K)) + t((F, K)) + 2 * t((1, K))
                        + t((bb, 1, P * F)) + 2 * t((bb, 1, P * V)))
        # In-kernel live values (counted in f32 even when tanh runs in bf16).
        live = (t((bb * V, K)) + t((bb, 1, V, K))       # Uvb + hoisted cast copy
                + t((bb * pc, K))                       # per-chunk Wh
                + 2 * t((bb, pc, V, K))                 # tanh input/output chunk
                + 3 * t((bb, pc, V))                    # energies / exp / weights
                + t((bb, pc, F))                        # aligned chunk
                + t((bb, V, F)))                        # vis value
        return pipeline + 2 * live                      # 2x slack for compiler temps

    vmem_cap = _vmem_capacity_bytes()
    budget = min(vmem_cap // 2, 48 * 1024 * 1024)

    if block_b is None:
        bb = B
        while bb > 1 and block_vmem_bytes(bb) > budget:
            bb = _largest_divisor_leq(B, bb - 1)
        if B >= 2:
            # v7x has 2 TensorCores: keep >= 2 grid steps so megacore sharding has
            # work for both; harmless on single-TC v5e/v6e and halves per-core VMEM.
            bb = min(bb, _largest_divisor_leq(B, B // 2))
        block_b = bb
    assert B % block_b == 0, "block_b must divide the batch"
    grid_b = B // block_b
    p_chunk = p_chunk_for(block_b)

    vmem_limit = int(min(0.9 * vmem_cap,
                         max(2 * block_vmem_bytes(block_b), 32 * 1024 * 1024)))

    wt = W.T                    # (Q, K)
    ut = U.T                    # (F, K)
    b2 = b.reshape(1, K)
    w2 = w.reshape(1, K)

    # Lane-dense output layout: last dim P*V / P*F (128 / 256 here) so HBM stores
    # are unmasked full-lane writes; the middle singleton dim keeps the block's
    # last two dims equal to the array dims for any block_b.
    out_shapes = (
        jax.ShapeDtypeStruct((B, 1, P * F), phr_feats.dtype),   # aligned (flattened)
        jax.ShapeDtypeStruct((B, 1, P * V), jnp.float32),       # weights (flattened)
        jax.ShapeDtypeStruct((B, 1, P * V), jnp.float32),       # energies (flattened)
    )

    kernel = functools.partial(semantic_alignment_kernel,
                               p_chunk=p_chunk, tanh_dtype=tanh_dtype)

    aligned_f, weights_f, energies_f = pl.pallas_call(
        kernel,
        out_shape=out_shapes,
        grid_spec=pltpu.PrefetchScalarGridSpec(
            num_scalar_prefetch=0,
            grid=(grid_b,),
            in_specs=[
                pl.BlockSpec((block_b, P, Q), lambda bi: (bi, 0, 0)),
                pl.BlockSpec((block_b, V, F), lambda bi: (bi, 0, 0)),
                pl.BlockSpec((Q, K), lambda bi: (0, 0)),
                pl.BlockSpec((F, K), lambda bi: (0, 0)),
                pl.BlockSpec((1, K), lambda bi: (0, 0)),
                pl.BlockSpec((1, K), lambda bi: (0, 0)),
            ],
            out_specs=[
                pl.BlockSpec((block_b, 1, P * F), lambda bi: (bi, 0, 0)),
                pl.BlockSpec((block_b, 1, P * V), lambda bi: (bi, 0, 0)),
                pl.BlockSpec((block_b, 1, P * V), lambda bi: (bi, 0, 0)),
            ],
        ),
        compiler_params=pltpu.CompilerParams(
            dimension_semantics=("parallel",),
            vmem_limit_bytes=vmem_limit),
    )(phr_feats, vis_feats, wt, ut, b2, w2)

    aligned = aligned_f.reshape(B, P, F)
    weights = weights_f.reshape(B, P, V)
    energies = energies_f.reshape(B, P, V)

    # phr passthrough / concat stays in XLA: cheap copy, and it keeps a minor-dim
    # concatenate (plus a redundant (B, P, Q) store) out of the kernel.
    semantic = jnp.concatenate([phr_feats, aligned], axis=-1)
    return semantic, weights, energies


def semantic_alignment_ref(phr_feats, vis_feats, W, U, b, w):
    Wh = jnp.einsum("bpq,kq->bpk", phr_feats, W)
    Uv = jnp.einsum("bvf,kf->bvk", vis_feats, U)
    t = jnp.tanh(Wh[:, :, None, :] + Uv[:, None, :, :] + b)
    energies = jnp.einsum("bpvk,k->bpv", t, w)
    weights = jax.nn.softmax(energies, axis=2)
    aligned = jnp.einsum("bpv,bvf->bpf", weights, vis_feats)
    sem = jnp.concatenate([phr_feats, aligned], axis=2)
    return sem, weights, energies


if __name__ == "__main__":
    B, P, V = 2, 8, 16          # batch, num phrases, num visual regions
    Q, F, K = 32, 32, 32        # query_size, feat_size, bottleneck_size

    key = jax.random.PRNGKey(0)
    k1, k2, k3, k4, k5 = jax.random.split(key, 5)

    phr_feats = jax.random.normal(k1, (B, P, Q), dtype=jnp.float32)
    vis_feats = jax.random.normal(k2, (B, V, F), dtype=jnp.float32)

    # Deterministic parameter init (PyTorch Linear-style uniform bounds).
    W = jax.random.uniform(k3, (K, Q), jnp.float32, -1.0 / np.sqrt(Q), 1.0 / np.sqrt(Q))
    U = jax.random.uniform(k4, (K, F), jnp.float32, -1.0 / np.sqrt(F), 1.0 / np.sqrt(F))
    b = jnp.ones((K,), dtype=jnp.float32)               # nn.Parameter(torch.ones(K))
    w = jax.random.uniform(k5, (K,), jnp.float32, -1.0 / np.sqrt(K), 1.0 / np.sqrt(K))

    sem, wts, en = semantic_alignment(phr_feats, vis_feats, W, U, b, w)
    jax.block_until_ready((sem, wts, en))

    sem_r, wts_r, en_r = semantic_alignment_ref(phr_feats, vis_feats, W, U, b, w)
    tol = 2e-2 if _use_bf16_tanh() else 1e-2             # bf16 tanh path on v6e/v7x
    np.testing.assert_allclose(np.asarray(en), np.asarray(en_r), rtol=tol, atol=tol)
    np.testing.assert_allclose(np.asarray(wts), np.asarray(wts_r), rtol=tol, atol=tol)
    np.testing.assert_allclose(np.asarray(sem), np.asarray(sem_r), rtol=tol, atol=tol)

    print("KERNEL_OK")
</pallas_src>

<mosaic_0001>
module attributes {stable_mosaic.version = 11 : i64} {
  func.func @semantic_alignment_kernel(%arg0: i32, %arg1: memref<1x8x32xf32, #tpu.memory_space<vmem>>, %arg2: memref<1x16x32xf32, #tpu.memory_space<vmem>>, %arg3: memref<32x32xf32, #tpu.memory_space<vmem>>, %arg4: memref<32x32xf32, #tpu.memory_space<vmem>>, %arg5: memref<1x32xf32, #tpu.memory_space<vmem>>, %arg6: memref<1x32xf32, #tpu.memory_space<vmem>>, %arg7: memref<1x1x256xf32, #tpu.memory_space<vmem>>, %arg8: memref<1x1x128xf32, #tpu.memory_space<vmem>>, %arg9: memref<1x1x128xf32, #tpu.memory_space<vmem>>) attributes {dimension_semantics = [#tpu.dimension_semantics<parallel>], iteration_bounds = array<i64: 2>, scalar_prefetch = 0 : i64, scratch_operands = 0 : i64, tpu.core_type = #tpu.core_type<tc>, window_params = [{transform_indices = @transform_0, window_bounds = array<i64: 1, 8, 32>}, {transform_indices = @transform_1, window_bounds = array<i64: 1, 16, 32>}, {pipeline_mode = #tpu.pipeline_mode<synchronous>, transform_indices = @transform_2, window_bounds = array<i64: 32, 32>}, {pipeline_mode = #tpu.pipeline_mode<synchronous>, transform_indices = @transform_3, window_bounds = array<i64: 32, 32>}, {pipeline_mode = #tpu.pipeline_mode<synchronous>, transform_indices = @transform_4, window_bounds = array<i64: 1, 32>}, {pipeline_mode = #tpu.pipeline_mode<synchronous>, transform_indices = @transform_5, window_bounds = array<i64: 1, 32>}, {transform_indices = @transform_6, window_bounds = array<i64: 1, 1, 256>}, {transform_indices = @transform_7, window_bounds = array<i64: 1, 1, 128>}, {transform_indices = @transform_8, window_bounds = array<i64: 1, 1, 128>}]} {
    %c0 = arith.constant 0 : index
    %c0_0 = arith.constant 0 : index
    %c0_1 = arith.constant 0 : index
    %0 = vector.load %arg2[%c0, %c0_0, %c0_1] : memref<1x16x32xf32, #tpu.memory_space<vmem>>, vector<1x16x32xf32>
    %c0_2 = arith.constant 0 : index
    %c0_3 = arith.constant 0 : index
    %1 = vector.load %arg3[%c0_2, %c0_3] : memref<32x32xf32, #tpu.memory_space<vmem>>, vector<32x32xf32>
    %2 = vector.shape_cast %0 : vector<1x16x32xf32> to vector<16x32xf32>
    %c0_4 = arith.constant 0 : index
    %c0_5 = arith.constant 0 : index
    %3 = vector.load %arg4[%c0_4, %c0_5] : memref<32x32xf32, #tpu.memory_space<vmem>>, vector<32x32xf32>
    %cst = arith.constant dense<0.000000e+00> : vector<16x32xf32>
    %4 = tpu.matmul %2, %3, %cst {dimension_numbers = #tpu.dot_dimension_numbers<[1], [0], [0], [1], [0, 0, 1, 1], [], []>} : vector<16x32xf32>, vector<32x32xf32>, vector<16x32xf32> -> vector<16x32xf32>
    %c0_6 = arith.constant 0 : index
    %c0_7 = arith.constant 0 : index
    %5 = vector.load %arg5[%c0_6, %c0_7] : memref<1x32xf32, #tpu.memory_space<vmem>>, vector<1x32xf32>
    %6 = vector.broadcast %5 : vector<1x32xf32> to vector<16x32xf32>
    %7 = arith.addf %4, %6 : vector<16x32xf32>
    %8 = vector.shape_cast %7 : vector<16x32xf32> to vector<1x16x32xf32>
    %9 = vector.shape_cast %8 : vector<1x16x32xf32> to vector<1x1x16x32xf32>
    %c0_8 = arith.constant 0 : index
    %c0_9 = arith.constant 0 : index
    %10 = vector.load %arg6[%c0_8, %c0_9] : memref<1x32xf32, #tpu.memory_space<vmem>>, vector<1x32xf32>
    %11 = vector.shape_cast %10 : vector<1x32xf32> to vector<1x1x1x32xf32>
    %c0_10 = arith.constant 0 : index
    %c0_11 = arith.constant 0 : index
    %c0_12 = arith.constant 0 : index
    %12 = vector.load %arg1[%c0_10, %c0_11, %c0_12] : memref<1x8x32xf32, #tpu.memory_space<vmem>>, vector<1x8x32xf32>
    %13 = vector.shape_cast %12 : vector<1x8x32xf32> to vector<8x32xf32>
    %cst_13 = arith.constant dense<0.000000e+00> : vector<8x32xf32>
    %14 = tpu.matmul %13, %1, %cst_13 {dimension_numbers = #tpu.dot_dimension_numbers<[1], [0], [0], [1], [0, 0, 1, 1], [], []>} : vector<8x32xf32>, vector<32x32xf32>, vector<8x32xf32> -> vector<8x32xf32>
    %15 = vector.shape_cast %14 : vector<8x32xf32> to vector<1x8x32xf32>
    %16 = vector.shape_cast %15 : vector<1x8x32xf32> to vector<1x8x1x32xf32>
    %17 = vector.broadcast %16 : vector<1x8x1x32xf32> to vector<1x8x16x32xf32>
    %18 = vector.broadcast %9 : vector<1x1x16x32xf32> to vector<1x8x16x32xf32>
    %19 = arith.addf %17, %18 : vector<1x8x16x32xf32>
    %20 = math.tanh %19 : vector<1x8x16x32xf32>
    %21 = vector.broadcast %11 : vector<1x1x1x32xf32> to vector<1x8x16x32xf32>
    %22 = arith.mulf %20, %21 : vector<1x8x16x32xf32>
    %cst_14 = arith.constant dense<0.000000e+00> : vector<1x8x16xf32>
    %23 = vector.multi_reduction <add>, %22, %cst_14 [3] : vector<1x8x16x32xf32> to vector<1x8x16xf32>
    %cst_15 = arith.constant dense<0xFF800000> : vector<1x8xf32>
    %24 = vector.multi_reduction <maximumf>, %23, %cst_15 [2] : vector<1x8x16xf32> to vector<1x8xf32>
    %25 = vector.shape_cast %24 : vector<1x8xf32> to vector<1x8x1xf32>
    %26 = vector.broadcast %25 : vector<1x8x1xf32> to vector<1x8x16xf32>
    %27 = arith.subf %23, %26 : vector<1x8x16xf32>
    %28 = math.exp %27 : vector<1x8x16xf32>
    %cst_16 = arith.constant dense<0.000000e+00> : vector<1x8xf32>
    %29 = vector.multi_reduction <add>, %28, %cst_16 [2] : vector<1x8x16xf32> to vector<1x8xf32>
    %30 = vector.shape_cast %29 : vector<1x8xf32> to vector<1x8x1xf32>
    %31 = tpu.reciprocal %30 {approx = true} : vector<1x8x1xf32> -> vector<1x8x1xf32>
    %32 = vector.broadcast %31 : vector<1x8x1xf32> to vector<1x8x16xf32>
    %33 = arith.mulf %28, %32 : vector<1x8x16xf32>
    "tpu.trace_start"() <{level = 10 : i32, message = "bpv,bvf->bpf"}> : () -> ()
    %cst_17 = arith.constant dense<0.000000e+00> : vector<1x8x32xf32>
    %34 = tpu.matmul %33, %0, %cst_17 {dimension_numbers = #tpu.dot_dimension_numbers<[2], [1], [1], [2], [0, 0, 0, 1, 1, 2], [0], [0]>} : vector<1x8x16xf32>, vector<1x16x32xf32>, vector<1x8x32xf32> -> vector<1x8x32xf32>
    "tpu.trace_stop"() : () -> ()
    %35 = vector.shape_cast %23 : vector<1x8x16xf32> to vector<1x1x128xf32>
    %c0_18 = arith.constant 0 : index
    %c0_19 = arith.constant 0 : index
    %c0_20 = arith.constant 0 : index
    %36 = vector.load %arg9[%c0_18, %c0_19, %c0_20] : memref<1x1x128xf32, #tpu.memory_space<vmem>>, vector<1x1x128xf32>
    tpu.vector_store %arg9[%c0_18, %c0_19, %c0_20], %35 {strides = array<i32>} : memref<1x1x128xf32, #tpu.memory_space<vmem>>, vector<1x1x128xf32>,
    %37 = vector.shape_cast %33 : vector<1x8x16xf32> to vector<1x1x128xf32>
    %c0_21 = arith.constant 0 : index
    %c0_22 = arith.constant 0 : index
    %c0_23 = arith.constant 0 : index
    %38 = vector.load %arg8[%c0_21, %c0_22, %c0_23] : memref<1x1x128xf32, #tpu.memory_space<vmem>>, vector<1x1x128xf32>
    tpu.vector_store %arg8[%c0_21, %c0_22, %c0_23], %37 {strides = array<i32>} : memref<1x1x128xf32, #tpu.memory_space<vmem>>, vector<1x1x128xf32>,
    %39 = vector.shape_cast %34 : vector<1x8x32xf32> to vector<1x1x256xf32>
    %c0_24 = arith.constant 0 : index
    %c0_25 = arith.constant 0 : index
    %c0_26 = arith.constant 0 : index
    %40 = vector.load %arg7[%c0_24, %c0_25, %c0_26] : memref<1x1x256xf32, #tpu.memory_space<vmem>>, vector<1x1x256xf32>
    tpu.vector_store %arg7[%c0_24, %c0_25, %c0_26], %39 {strides = array<i32>} : memref<1x1x256xf32, #tpu.memory_space<vmem>>, vector<1x1x256xf32>,
    return
  }
  func.func @transform_0(%arg0: i32) -> (i32, i32, i32) {
    %c0_i32 = arith.constant 0 : i32
    %c0_i32_0 = arith.constant 0 : i32
    %c0_i32_1 = arith.constant 0 : i32
    return %arg0, %c0_i32, %c0_i32_0 : i32, i32, i32
  }
  func.func @transform_1(%arg0: i32) -> (i32, i32, i32) {
    %c0_i32 = arith.constant 0 : i32
    %c0_i32_0 = arith.constant 0 : i32
    %c0_i32_1 = arith.constant 0 : i32
    return %arg0, %c0_i32, %c0_i32_0 : i32, i32, i32
  }
  func.func @transform_2(%arg0: i32) -> (i32, i32) {
    %c0_i32 = arith.constant 0 : i32
    %c0_i32_0 = arith.constant 0 : i32
    %c0_i32_1 = arith.constant 0 : i32
    return %c0_i32, %c0_i32_0 : i32, i32
  }
  func.func @transform_3(%arg0: i32) -> (i32, i32) {
    %c0_i32 = arith.constant 0 : i32
    %c0_i32_0 = arith.constant 0 : i32
    %c0_i32_1 = arith.constant 0 : i32
    return %c0_i32, %c0_i32_0 : i32, i32
  }
  func.func @transform_4(%arg0: i32) -> (i32, i32) {
    %c0_i32 = arith.constant 0 : i32
    %c0_i32_0 = arith.constant 0 : i32
    %c0_i32_1 = arith.constant 0 : i32
    return %c0_i32, %c0_i32_0 : i32, i32
  }
  func.func @transform_5(%arg0: i32) -> (i32, i32) {
    %c0_i32 = arith.constant 0 : i32
    %c0_i32_0 = arith.constant 0 : i32
    %c0_i32_1 = arith.constant 0 : i32
    return %c0_i32, %c0_i32_0 : i32, i32
  }
  func.func @transform_6(%arg0: i32) -> (i32, i32, i32) {
    %c0_i32 = arith.constant 0 : i32
    %c0_i32_0 = arith.constant 0 : i32
    %c0_i32_1 = arith.constant 0 : i32
    return %arg0, %c0_i32, %c0_i32_0 : i32, i32, i32
  }
  func.func @transform_7(%arg0: i32) -> (i32, i32, i32) {
    %c0_i32 = arith.constant 0 : i32
    %c0_i32_0 = arith.constant 0 : i32
    %c0_i32_1 = arith.constant 0 : i32
    return %arg0, %c0_i32, %c0_i32_0 : i32, i32, i32
  }
  func.func @transform_8(%arg0: i32) -> (i32, i32, i32) {
    %c0_i32 = arith.constant 0 : i32
    %c0_i32_0 = arith.constant 0 : i32
    %c0_i32_1 = arith.constant 0 : i32
    return %arg0, %c0_i32, %c0_i32_0 : i32, i32, i32
  }
}

</mosaic_0001>

<llo_original>
// kernel: tpu_custom_call.1
$region0: #{tpu_custom_call.1}
  #allocation0 [shape = 'u32[]', space=smem, size = 0x4, offset = 0x4, fixed_abs, tag = 'smem constant byte address 0x4 - core index']
  #allocation1 [shape = 'u32[72,128]{1,0:T(1,128)}', space=vmem, size = 0x9000, scoped, tag = 'internal scratch']
  %s0 = inlined_call_operand.hbm [shape: f32[2,8,32], index: 0, kind: input, shape index: {}]
  %s1 = inlined_call_operand.hbm [shape: f32[2,16,32], index: 1, kind: input, shape index: {}]
  %s2 = inlined_call_operand.hbm [shape: f32[32,32], index: 2, kind: input, shape index: {}]
  %s3 = inlined_call_operand.hbm [shape: f32[32,32], index: 3, kind: input, shape index: {}]
  %s4 = inlined_call_operand.vmem [shape: f32[1,32], index: 4, kind: input, shape index: {}]
  %s5 = inlined_call_operand.vmem [shape: f32[1,32], index: 5, kind: input, shape index: {}]
  %s6 = inlined_call_operand.hbm [shape: f32[2,1,256], index: 6, kind: output, shape index: {0}]
  %s7 = inlined_call_operand.hbm [shape: f32[2,1,128], index: 7, kind: output, shape index: {1}]
  %s8 = inlined_call_operand.hbm [shape: f32[2,1,128], index: 8, kind: output, shape index: {2}]
  %9 = xla_tuple %s6, %s7, %s8
  %s10 = sld [smem:[#allocation0]]
  $region89: #{tpu_custom_call.1} parent=0
    _
  %s12 = ssub.s32 1, %s10
  %s13 = scalar_select 0, %s12, %s10
  $region1: #{tpu_custom_call.1} parent=0
    #allocation2 [shape = 'u8[8192]{0}', space=vmem, size = 0x2000, scoped, tag = 'input window, operand 0']
    #allocation3 [shape = 's32[2]{0}', space=sflag, size = 0x8, scoped, tag = 'scoped memory for tpu_custom_call.1']
    #allocation4 [shape = 's32[2]{0}', space=sflag, size = 0x8, scoped, tag = 'scoped memory for tpu_custom_call.1']
    #allocation5 [shape = 'u8[16384]{0}', space=vmem, size = 0x4000, scoped, tag = 'input window, operand 1']
    #allocation6 [shape = 's32[2]{0}', space=sflag, size = 0x8, scoped, tag = 'scoped memory for tpu_custom_call.1']
    #allocation7 [shape = 'u8[16384]{0}', space=vmem, size = 0x4000, scoped, tag = 'input window, operand 2, single buffered']
    #allocation8 [shape = 'u8[16384]{0}', space=vmem, size = 0x4000, scoped, tag = 'input window, operand 3, single buffered']
    #allocation9 [shape = 's32[1]{0}', space=sflag, size = 0x4, scoped, tag = 'scoped memory for tpu_custom_call.1']
    #allocation10 [shape = 'u8[2048]{0}', space=vmem, size = 0x800, scoped, tag = 'output window, operand 0']
    #allocation11 [shape = 'u8[1024]{0}', space=vmem, size = 0x400, scoped, tag = 'output window, operand 1']
    #allocation12 [shape = 's32[2]{0}', space=sflag, size = 0x8, scoped, tag = 'scoped memory for tpu_custom_call.1']
    #allocation13 [shape = 'u8[1024]{0}', space=vmem, size = 0x400, scoped, tag = 'output window, operand 2']
    %14 = vsyncpa [#allocation3], 0
    %s15 = scalar_lea.sflag [#allocation3], 1
    %16 = vsyncpa %s15, 0
    %17 = vsyncpa [#allocation6], 0
    %s18 = scalar_lea.sflag [#allocation6], 1
    %19 = vsyncpa %s18, 0
    %20 = vsyncpa [#allocation9], 0
    %21 = vsyncpa [#allocation4], 0
    %s22 = scalar_lea.sflag [#allocation4], 1
    %23 = vsyncpa %s22, 0
    %24 = vsyncpa [#allocation12], 0
    %s25 = scalar_lea.sflag [#allocation12], 1
    %26 = vsyncpa %s25, 0
    loop: start=0, step=1, limit=4
    $region2: #{tpu_custom_call.1} parent=1 // loop_pre_header
      _
    $region3: #{tpu_custom_call.1} parent=1 // loop_header
      %s28 = sphi 0, %s32
      %p29 = scmp.ge.s32.totalorder %s28, 4
      %s38 = sphi 0, %s40
      %s41 = sphi 0, %s38
      %s42 = sphi 0, %s41
      %s58 = sphi 0, %s42
      %s64 = sphi 0, %s66
      %s67 = sphi 0, %s64
      %s68 = sphi 0, %s67
      %s84 = sphi 0, %s68
      %s88 = sphi 0, %s88
      %s90 = sphi 0, %s88
      %s91 = sphi 0, %s90
      %s105 = sphi 0, %s91
      %s109 = sphi 0, %s109
      %s111 = sphi 0, %s109
      %s112 = sphi 0, %s111
      %s126 = sphi 0, %s112
      %s130 = sphi 0, %s130
      %s132 = sphi 0, %s130
      %s133 = sphi 0, %s132
      %s147 = sphi 0, %s133
      %s151 = sphi 0, %s151
      %s153 = sphi 0, %s151
      %s154 = sphi 0, %s153
      %s168 = sphi 0, %s154
      %s174 = sphi 0, %s176
      %s177 = sphi 0, %s174
      %s178 = sphi 0, %s177
      %s194 = sphi 0, %s178
      %s200 = sphi 0, %s202
      %s203 = sphi 0, %s200
      %s204 = sphi 0, %s203
      %s220 = sphi 0, %s204
      %s226 = sphi 0, %s228
      %s229 = sphi 0, %s226
      %s230 = sphi 0, %s229
      %s246 = sphi 0, %s230
    $region4: #{tpu_custom_call.1} parent=1 // loop_header_branch
      %31 = sbr.rel (%p29) target = $region8
    $region5: #{tpu_custom_call.1} parent=1 // loop_body
      %s33 = ssub.s32 %s28, 1
      %s34 = ssub.s32 %s28, 2
      %s35 = sadd.s32 %s28, 1
      %s36 = ssub.s32 %s28, %s35
      %p37 = scmp.eq.s32.totalorder %s36, 0
      %s39 = sadd.s32 %s38, 1
      %s40 = scalar_select %p37, %s38, %s39
      %p43 = pneg %p37
      %p44 = scmp.eq.s32.totalorder %s28, 1
      %p45 = por %p43, %p44
      %p46 = scmp.ne.s32.totalorder %s38, %s41
      %p47 = scmp.eq.s32.totalorder %s28, 0
      %p48 = por %p46, %p47
      %p49 = scmp.ne.s32.totalorder %s38, %s41
      %p50 = scmp.eq.s32.totalorder %s33, 1
      %p51 = por %p49, %p50
      %p52 = scmp.ne.s32.totalorder %s41, %s42
      %p53 = scmp.eq.s32.totalorder %s33, 0
      %p54 = por %p52, %p53
      %p55 = scmp.ne.s32.totalorder %s41, %s42
      %p56 = scmp.eq.s32.totalorder %s34, 1
      %p57 = por %p55, %p56
      %p59 = scmp.ne.s32.totalorder %s42, %s58
      %p60 = scmp.eq.s32.totalorder %s34, 0
      %p61 = por %p59, %p60
      %s62 = ssub.s32 %s28, %s35
      %p63 = scmp.eq.s32.totalorder %s62, 0
      %s65 = sadd.s32 %s64, 1
      %s66 = scalar_select %p63, %s64, %s65
      %p69 = pneg %p63
      %p70 = scmp.eq.s32.totalorder %s28, 1
      %p71 = por %p69, %p70
      %p72 = scmp.ne.s32.totalorder %s64, %s67
      %p73 = scmp.eq.s32.totalorder %s28, 0
      %p74 = por %p72, %p73
      %p75 = scmp.ne.s32.totalorder %s64, %s67
      %p76 = scmp.eq.s32.totalorder %s33, 1
      %p77 = por %p75, %p76
      %p78 = scmp.ne.s32.totalorder %s67, %s68
      %p79 = scmp.eq.s32.totalorder %s33, 0
      %p80 = por %p78, %p79
      %p81 = scmp.ne.s32.totalorder %s67, %s68
      %p82 = scmp.eq.s32.totalorder %s34, 1
      %p83 = por %p81, %p82
      %p85 = scmp.ne.s32.totalorder %s68, %s84
      %p86 = scmp.eq.s32.totalorder %s34, 0
      %p87 = por %p85, %p86
      %s89 = sadd.s32 %s88, 1
      %p92 = scmp.eq.s32.totalorder %s28, 1
      %p93 = scmp.ne.s32.totalorder %s88, %s90
      %p94 = scmp.eq.s32.totalorder %s28, 0
      %p95 = por %p93, %p94
      %p96 = scmp.ne.s32.totalorder %s88, %s90
      %p97 = scmp.eq.s32.totalorder %s33, 1
      %p98 = por %p96, %p97
      %p99 = scmp.ne.s32.totalorder %s90, %s91
      %p100 = scmp.eq.s32.totalorder %s33, 0
      %p101 = por %p99, %p100
      %p102 = scmp.ne.s32.totalorder %s90, %s91
      %p103 = scmp.eq.s32.totalorder %s34, 1
      %p104 = por %p102, %p103
      %p106 = scmp.ne.s32.totalorder %s91, %s105
      %p107 = scmp.eq.s32.totalorder %s34, 0
      %p108 = por %p106, %p107
      %s110 = sadd.s32 %s109, 1
      %p113 = scmp.eq.s32.totalorder %s28, 1
      %p114 = scmp.ne.s32.totalorder %s109, %s111
      %p115 = scmp.eq.s32.totalorder %s28, 0
      %p116 = por %p114, %p115
      %p117 = scmp.ne.s32.totalorder %s109, %s111
      %p118 = scmp.eq.s32.totalorder %s33, 1
      %p119 = por %p117, %p118
      %p120 = scmp.ne.s32.totalorder %s111, %s112
      %p121 = scmp.eq.s32.totalorder %s33, 0
      %p122 = por %p120, %p121
      %p123 = scmp.ne.s32.totalorder %s111, %s112
      %p124 = scmp.eq.s32.totalorder %s34, 1
      %p125 = por %p123, %p124
      %p127 = scmp.ne.s32.totalorder %s112, %s126
      %p128 = scmp.eq.s32.totalorder %s34, 0
      %p129 = por %p127, %p128
      %s131 = sadd.s32 %s130, 1
      %p134 = scmp.eq.s32.totalorder %s28, 1
      %p135 = scmp.ne.s32.totalorder %s130, %s132
      %p136 = scmp.eq.s32.totalorder %s28, 0
      %p137 = por %p135, %p136
      %p138 = scmp.ne.s32.totalorder %s130, %s132
      %p139 = scmp.eq.s32.totalorder %s33, 1
      %p140 = por %p138, %p139
      %p141 = scmp.ne.s32.totalorder %s132, %s133
      %p142 = scmp.eq.s32.totalorder %s33, 0
      %p143 = por %p141, %p142
      %p144 = scmp.ne.s32.totalorder %s132, %s133
      %p145 = scmp.eq.s32.totalorder %s34, 1
      %p146 = por %p144, %p145
      %p148 = scmp.ne.s32.totalorder %s133, %s147
      %p149 = scmp.eq.s32.totalorder %s34, 0
      %p150 = por %p148, %p149
      %s152 = sadd.s32 %s151, 1
      %p155 = scmp.eq.s32.totalorder %s28, 1
      %p156 = scmp.ne.s32.totalorder %s151, %s153
      %p157 = scmp.eq.s32.totalorder %s28, 0
      %p158 = por %p156, %p157
      %p159 = scmp.ne.s32.totalorder %s151, %s153
      %p160 = scmp.eq.s32.totalorder %s33, 1
      %p161 = por %p159, %p160
      %p162 = scmp.ne.s32.totalorder %s153, %s154
      %p163 = scmp.eq.s32.totalorder %s33, 0
      %p164 = por %p162, %p163
      %p165 = scmp.ne.s32.totalorder %s153, %s154
      %p166 = scmp.eq.s32.totalorder %s34, 1
      %p167 = por %p165, %p166
      %p169 = scmp.ne.s32.totalorder %s154, %s168
      %p170 = scmp.eq.s32.totalorder %s34, 0
      %p171 = por %p169, %p170
      %s172 = ssub.s32 %s28, %s35
      %p173 = scmp.eq.s32.totalorder %s172, 0
      %s175 = sadd.s32 %s174, 1
      %s176 = scalar_select %p173, %s174, %s175
      %p179 = pneg %p173
      %p180 = scmp.eq.s32.totalorder %s28, 1
      %p181 = por %p179, %p180
      %p182 = scmp.ne.s32.totalorder %s174, %s177
      %p183 = scmp.eq.s32.totalorder %s28, 0
      %p184 = por %p182, %p183
      %p185 = scmp.ne.s32.totalorder %s174, %s177
      %p186 = scmp.eq.s32.totalorder %s33, 1
      %p187 = por %p185, %p186
      %p188 = scmp.ne.s32.totalorder %s177, %s178
      %p189 = scmp.eq.s32.totalorder %s33, 0
      %p190 = por %p188, %p189
      %p191 = scmp.ne.s32.totalorder %s177, %s178
      %p192 = scmp.eq.s32.totalorder %s34, 1
      %p193 = por %p191, %p192
      %p195 = scmp.ne.s32.totalorder %s178, %s194
      %p196 = scmp.eq.s32.totalorder %s34, 0
      %p197 = por %p195, %p196
      %s198 = ssub.s32 %s28, %s35
      %p199 = scmp.eq.s32.totalorder %s198, 0
      %s201 = sadd.s32 %s200, 1
      %s202 = scalar_select %p199, %s200, %s201
      %p205 = pneg %p199
      %p206 = scmp.eq.s32.totalorder %s28, 1
      %p207 = por %p205, %p206
      %p208 = scmp.ne.s32.totalorder %s200, %s203
      %p209 = scmp.eq.s32.totalorder %s28, 0
      %p210 = por %p208, %p209
      %p211 = scmp.ne.s32.totalorder %s200, %s203
      %p212 = scmp.eq.s32.totalorder %s33, 1
      %p213 = por %p211, %p212
      %p214 = scmp.ne.s32.totalorder %s203, %s204
      %p215 = scmp.eq.s32.totalorder %s33, 0
      %p216 = por %p214, %p215
      %p217 = scmp.ne.s32.totalorder %s203, %s204
      %p218 = scmp.eq.s32.totalorder %s34, 1
      %p219 = por %p217, %p218
      %p221 = scmp.ne.s32.totalorder %s204, %s220
      %p222 = scmp.eq.s32.totalorder %s34, 0
      %p223 = por %p221, %p222
      %s224 = ssub.s32 %s28, %s35
      %p225 = scmp.eq.s32.totalorder %s224, 0
      %s227 = sadd.s32 %s226, 1
      %s228 = scalar_select %p225, %s226, %s227
      %p231 = pneg %p225
      %p232 = scmp.eq.s32.totalorder %s28, 1
      %p233 = por %p231, %p232
      %p234 = scmp.ne.s32.totalorder %s226, %s229
      %p235 = scmp.eq.s32.totalorder %s28, 0
      %p236 = por %p234, %p235
      %p237 = scmp.ne.s32.totalorder %s226, %s229
      %p238 = scmp.eq.s32.totalorder %s33, 1
      %p239 = por %p237, %p238
      %p240 = scmp.ne.s32.totalorder %s229, %s230
      %p241 = scmp.eq.s32.totalorder %s33, 0
      %p242 = por %p240, %p241
      %p243 = scmp.ne.s32.totalorder %s229, %s230
      %p244 = scmp.eq.s32.totalorder %s34, 1
      %p245 = por %p243, %p244
      %p247 = scmp.ne.s32.totalorder %s230, %s246
      %p248 = scmp.eq.s32.totalorder %s34, 0
      %p249 = por %p247, %p248
      %p250 = scmp.le.s32.totalorder 1, %s28
      %p251 = scmp.lt.s32.totalorder %s28, 3
      %p252 = pnand %p250, %p251
      %p253 = pneg %p252
      // Predicated region
      $region9: #{tpu_custom_call.1} parent=5 // pred_check
        _
      $region10: #{tpu_custom_call.1} parent=5 // pred_check_branch
        %255 = sbr.rel (%p252) target = $region12
      $region11: #{tpu_custom_call.1} parent=5 // pred_region
        %s256 = ssub.s32 %s28, 1
        // Predicated region
        $region13: #{tpu_custom_call.1} parent=11 // pred_check
          %p257 = pneg %p101
        $region14: #{tpu_custom_call.1} parent=11 // pred_check_branch
          %259 = sbr.rel (%p257) target = $region16
        $region15: #{tpu_custom_call.1} parent=11 // pred_region
          %261 = vsyncadd [#allocation6], 0
          %s262 = sshll.u32 %s2, 4
          %s263 = int_to_ptr.hbm [resolvable:$true] %s262
          %s264 = sshll.u32 [#allocation7], 4
          %s265 = int_to_ptr.vmem [resolvable:$true] %s264
          %270 = dma.hbm_to_vmem [thread:$0]  %s263, 512, %s265, [#allocation6], 128, 128, 8
        $region16: #{tpu_custom_call.1} parent=11 // pred_fallthru
          _
        // Predicated region
        $region17: #{tpu_custom_call.1} parent=11 // pred_check
          %p271 = pneg %p122
        $region18: #{tpu_custom_call.1} parent=11 // pred_check_branch
          %273 = sbr.rel (%p271) target = $region20
        $region19: #{tpu_custom_call.1} parent=11 // pred_region
          %275 = vsyncadd [#allocation9], 0
          %s276 = sshll.u32 %s3, 4
          %s277 = int_to_ptr.hbm [resolvable:$true] %s276
          %s278 = sshll.u32 [#allocation8], 4
          %s279 = int_to_ptr.vmem [resolvable:$true] %s278
          %284 = dma.hbm_to_vmem [thread:$0]  %s277, 512, %s279, [#allocation9], 128, 128, 8
        $region20: #{tpu_custom_call.1} parent=11 // pred_fallthru
          _
        // Predicated region
        $region21: #{tpu_custom_call.1} parent=11 // pred_check
          %p285 = pneg %p143
        $region22: #{tpu_custom_call.1} parent=11 // pred_check_branch
          %287 = sbr.rel (%p285) target = $region24
        $region23: #{tpu_custom_call.1} parent=11 // pred_region
          _
        $region24: #{tpu_custom_call.1} parent=11 // pred_fallthru
          _
        // Predicated region
        $region25: #{tpu_custom_call.1} parent=11 // pred_check
          %p288 = pneg %p164
        $region26: #{tpu_custom_call.1} parent=11 // pred_check_branch
          %290 = sbr.rel (%p288) target = $region28
        $region27: #{tpu_custom_call.1} parent=11 // pred_region
          _
        $region28: #{tpu_custom_call.1} parent=11 // pred_fallthru
          _
      $region12: #{tpu_custom_call.1} parent=5 // pred_fallthru
        _
      %p291 = scmp.lt.s32.totalorder %s28, 2
      // Predicated region
      $region29: #{tpu_custom_call.1} parent=5 // pred_check
        %p292 = pneg %p291
      $region30: #{tpu_custom_call.1} parent=5 // pred_check_branch
        %294 = sbr.rel (%p292) target = $region32
      $region31: #{tpu_custom_call.1} parent=5 // pred_region
        // Predicated region
        $region33: #{tpu_custom_call.1} parent=31 // pred_check
          %p295 = pneg %p48
        $region34: #{tpu_custom_call.1} parent=31 // pred_check_branch
          %297 = sbr.rel (%p295) target = $region36
        $region35: #{tpu_custom_call.1} parent=31 // pred_region
          %s298 = sand.u32 %s38, 1
          %s299 = scalar_lea.sflag [#allocation3], %s298
          %s300 = sand.u32 %s38, 1
          %s301 = smul.addr %s300, 8
          %s302 = scalar_lea.vmem [#allocation2], %s301
          %304 = vsyncadd %s299, 0
          %s305 = smul.addr %s28, 8
          %s306 = scalar_lea.hbm %s0, %s305
          %s308 = sshll.u32 %s306, 4
          %s309 = int_to_ptr.hbm [resolvable:$true] %s308
          %s310 = sshll.u32 %s302, 4
          %s311 = int_to_ptr.vmem [resolvable:$true] %s310
          %313 = dma.hbm_to_vmem [thread:$0]  %s309, 128, %s311, %s299
        $region36: #{tpu_custom_call.1} parent=31 // pred_fallthru
          _
        // Predicated region
        $region37: #{tpu_custom_call.1} parent=31 // pred_check
          %p314 = pneg %p74
        $region38: #{tpu_custom_call.1} parent=31 // pred_check_branch
          %316 = sbr.rel (%p314) target = $region40
        $region39: #{tpu_custom_call.1} parent=31 // pred_region
          %s317 = sand.u32 %s28, 1
          %s318 = scalar_lea.sflag [#allocation6], %s317
          %s319 = sand.u32 %s64, 1
          %s320 = smul.addr %s319, 16
          %s321 = scalar_lea.vmem [#allocation5], %s320
          %323 = vsyncadd %s318, 0
          %s324 = smul.addr %s28, 2
          %s325 = smul.addr %s324, 8
          %s326 = scalar_lea.hbm %s1, %s325
          %s327 = sshll.u32 %s326, 4
          %s328 = int_to_ptr.hbm [resolvable:$true] %s327
          %s329 = sshll.u32 %s321, 4
          %s330 = int_to_ptr.vmem [resolvable:$true] %s329
          %335 = dma.hbm_to_vmem [thread:$0]  %s328, 256, %s330, %s318, 128, 128, 8
        $region40: #{tpu_custom_call.1} parent=31 // pred_fallthru
          _
      $region32: #{tpu_custom_call.1} parent=5 // pred_fallthru
        _
      %p336 = scmp.le.s32.totalorder 1, %s28
      %p337 = scmp.lt.s32.totalorder %s28, 3
      %p338 = pnand %p336, %p337
      %p339 = pneg %p338
      // Predicated region
      $region41: #{tpu_custom_call.1} parent=5 // pred_check
        _
      $region42: #{tpu_custom_call.1} parent=5 // pred_check_branch
        %341 = sbr.rel (%p338) target = $region44
      $region43: #{tpu_custom_call.1} parent=5 // pred_region
        %s342 = ssub.s32 %s28, 1
        %s343 = sand.u32 %s41, 1
        %s344 = scalar_lea.sflag [#allocation3], %s343
        %s345 = sand.u32 %s41, 1
        %s346 = smul.addr %s345, 8
        %s347 = scalar_lea.vmem [#allocation2], %s346
        // Predicated region
        $region45: #{tpu_custom_call.1} parent=43 // pred_check
          %p348 = pneg %p54
        $region46: #{tpu_custom_call.1} parent=43 // pred_check_branch
          %350 = sbr.rel (%p348) target = $region48
        $region47: #{tpu_custom_call.1} parent=43 // pred_region
          %352 = dma.done %s344, 128
        $region48: #{tpu_custom_call.1} parent=43 // pred_fallthru
          _
        %s353 = sand.u32 %s33, 1
        %s354 = scalar_lea.sflag [#allocation6], %s353
        %s355 = sand.u32 %s67, 1
        %s356 = smul.addr %s355, 16
        %s357 = scalar_lea.vmem [#allocation5], %s356
        // Predicated region
        $region49: #{tpu_custom_call.1} parent=43 // pred_check
          %p358 = pneg %p80
        $region50: #{tpu_custom_call.1} parent=43 // pred_check_branch
          %360 = sbr.rel (%p358) target = $region52
        $region51: #{tpu_custom_call.1} parent=43 // pred_region
          %362 = dma.done %s354, 256
        $region52: #{tpu_custom_call.1} parent=43 // pred_fallthru
          _
        // Predicated region
        $region53: #{tpu_custom_call.1} parent=43 // pred_check
          %p363 = pneg %p101
        $region54: #{tpu_custom_call.1} parent=43 // pred_check_branch
          %365 = sbr.rel (%p363) target = $region56
        $region55: #{tpu_custom_call.1} parent=43 // pred_region
          %367 = dma.done [#allocation6], 512
        $region56: #{tpu_custom_call.1} parent=43 // pred_fallthru
          _
        // Predicated region
        $region57: #{tpu_custom_call.1} parent=43 // pred_check
          %p368 = pneg %p122
        $region58: #{tpu_custom_call.1} parent=43 // pred_check_branch
          %370 = sbr.rel (%p368) target = $region60
        $region59: #{tpu_custom_call.1} parent=43 // pred_region
          %372 = dma.done [#allocation9], 512
        $region60: #{tpu_custom_call.1} parent=43 // pred_fallthru
          _
        %s373 = sand.u32 %s41, 1
        %s374 = scalar_lea.sflag [#allocation3], %s373
        %s375 = sand.u32 %s41, 1
        %s376 = smul.addr %s375, 8
        %s377 = scalar_lea.vmem [#allocation2], %s376
        %p378 = pneg %p54
        %p379 = pneg %p51
        %s380 = sand.u32 %s33, 1
        %s381 = scalar_lea.sflag [#allocation6], %s380
        %s382 = sand.u32 %s67, 1
        %s383 = smul.addr %s382, 16
        %s384 = scalar_lea.vmem [#allocation5], %s383
        %p385 = pneg %p80
        %p386 = pneg %p77
        %p387 = pneg %p101
        %p388 = pneg %p98
        %p389 = pneg %p122
        %p390 = pneg %p119
        %p391 = pneg %p143
        %p392 = pneg %p140
        %p393 = pneg %p164
        %p394 = pneg %p161
        %p395 = pneg %p190
        %p396 = pneg %p187
        %s397 = sand.u32 %s177, 1
        %s398 = scalar_lea.sflag [#allocation4], %s397
        %s399 = sand.u32 %s177, 1
        %s400 = smul.addr %s399, 2
        %s401 = scalar_lea.vmem [#allocation10], %s400
        %p402 = pneg %p216
        %p403 = pneg %p213
        %s404 = sand.u32 %s33, 1
        %s405 = scalar_lea.sflag [#allocation12], %s404
        %s406 = sand.u32 %s203, 1
        %s407 = scalar_lea.vmem [#allocation11], %s406
        %p408 = pneg %p242
        %p409 = pneg %p239
        %s410 = sand.u32 %s33, 1
        %s411 = scalar_lea.sflag [#allocation12], %s410
        %s412 = sand.u32 %s229, 1
        %s413 = scalar_lea.vmem [#allocation13], %s412
        %v414 = vld [vmem:[%s357] sm:$0xff]
        %v415 = vld [vmem:[%s357 + $0x8] sm:$0xff]
        %v416 = vld [vmem:[#allocation7] sm:$0xff]
        %v417 = vld [vmem:[#allocation7 + $0x8] sm:$0xff]
        %v418 = vld [vmem:[#allocation7 + $0x10] sm:$0xff]
        %v419 = vld [vmem:[#allocation7 + $0x18] sm:$0xff]
        %v420 = vld [vmem:[#allocation8] sm:$0xff]
        %v421 = vld [vmem:[#allocation8 + $0x8] sm:$0xff]
        %v422 = vld [vmem:[#allocation8 + $0x10] sm:$0xff]
        %v423 = vld [vmem:[#allocation8 + $0x18] sm:$0xff]
        %v424 = vld [vmem:[%s4] sm:$0x1]
        %v426 = vperm.slane %v424, 0
        %vm428 = vcmask 261120
        %v430 = vsel %vm428, %v414, 0
        %v433 = vsel %vm428, %v415, 0
        %435 = vmatpush.msra.mxu0 0.0
        %436 = vmatpush.msra.mxu0 0.0
        %437 = vmatpush.msra.mxu0 0.0
        %438 = vmatpush.msra.mxu0 0.0
        %439 = vmatpush.msra.mxu0 0.0
        %440 = vmatpush.msra.mxu0 0.0
        %441 = vmatpush.msra.mxu0 0.0
        %442 = vmatpush.msra.mxu0 0.0
        %443 = vmatpush.msra.mxu0 0.0
        %444 = vmatpush.msra.mxu0 0.0
        %445 = vmatpush.msra.mxu0 0.0
        %446 = vmatpush.msra.mxu0 0.0
        %447 = vmatpush.msra.mxu0 %v423
        %448 = vmatpush.msra.mxu0 %v422
        %449 = vmatpush.msra.mxu0 %v421
        %450 = vmatpush.msra.mxu0 %v420
        %451 = vmatmul.f32.gmra.mxu0 %v430
        %v452 = vpop.f32.mrf.mxu0
        %v453 = vadd.f32 %v426, %v452
        %454 = vmatmul.f32.gmra.mxu0 %v433
        %v455 = vpop.f32.mrf.mxu0
        %v456 = vadd.f32 %v426, %v455
        %457 = vdwg.mxu0
        %v458 = vld [vmem:[%s5] sm:$0x1]
        %v459 = vld [vmem:[%s347] sm:$0xff]
        %v461 = vsel %vm428, %v459, 0
        %463 = vmatpush.msra.mxu0 0.0
        %464 = vmatpush.msra.mxu0 0.0
        %465 = vmatpush.msra.mxu0 0.0
        %466 = vmatpush.msra.mxu0 0.0
        %467 = vmatpush.msra.mxu0 0.0
        %468 = vmatpush.msra.mxu0 0.0
        %469 = vmatpush.msra.mxu0 0.0
        %470 = vmatpush.msra.mxu0 0.0
        %471 = vmatpush.msra.mxu0 0.0
        %472 = vmatpush.msra.mxu0 0.0
        %473 = vmatpush.msra.mxu0 0.0
        %474 = vmatpush.msra.mxu0 0.0
        %475 = vmatpush.msra.mxu0 %v419
        %476 = vmatpush.msra.mxu0 %v418
        %477 = vmatpush.msra.mxu0 %v417
        %478 = vmatpush.msra.mxu0 %v416
        %479 = vmatmul.f32.gmra.mxu0 %v461
        %v480 = vpop.f32.mrf.mxu0
        %v481 = vadd.f32 0.0, %v480
        %482 = vdwg.mxu0
        %v484 = vrot.slane %v481, 1
        %v485 = vrot.slane %v481, 2
        %v486 = vrot.slane %v481, 3
        %v487 = vrot.slane %v481, 4
        %v488 = vrot.slane %v481, 5
        %v489 = vrot.slane %v481, 6
        %v490 = vrot.slane %v481, 7
        %v491 = vperm.slane %v481, 0
        %v492 = vperm.slane %v484, 0
        %v493 = vperm.slane %v485, 0
        %v494 = vperm.slane %v486, 0
        %v495 = vperm.slane %v487, 0
        %v496 = vperm.slane %v488, 0
        %v497 = vperm.slane %v489, 0
        %v498 = vperm.slane %v490, 0
        %v507 = vadd.f32 %v491, %v453
        %v508 = vadd.f32 %v491, %v456
        %v509 = vadd.f32 %v492, %v453
        %v510 = vadd.f32 %v492, %v456
        %v511 = vadd.f32 %v493, %v453
        %v512 = vadd.f32 %v493, %v456
        %v513 = vadd.f32 %v494, %v453
        %v514 = vadd.f32 %v494, %v456
        %v515 = vadd.f32 %v495, %v453
        %v516 = vadd.f32 %v495, %v456
        %v517 = vadd.f32 %v496, %v453
        %v518 = vadd.f32 %v496, %v456
        %v519 = vadd.f32 %v497, %v453
        %v520 = vadd.f32 %v497, %v456
        %v521 = vadd.f32 %v498, %v453
        %v522 = vadd.f32 %v498, %v456
        %v523 = vtanh.pop %v507
        %v524 = vtanh.pop %v508
        %v525 = vtanh.pop %v509
        %v526 = vtanh.pop %v510
        %v527 = vtanh.pop %v511
        %v528 = vtanh.pop %v512
        %v529 = vtanh.pop %v513
        %v530 = vtanh.pop %v514
        %v531 = vtanh.pop %v515
        %v532 = vtanh.pop %v516
        %v533 = vtanh.pop %v517
        %v534 = vtanh.pop %v518
        %v535 = vtanh.pop %v519
        %v536 = vtanh.pop %v520
        %v537 = vtanh.pop %v521
        %v538 = vtanh.pop %v522
        %v540 = vperm.slane %v458, 0
        %v542 = vmul.f32 %v523, %v540
        %v543 = vmul.f32 %v524, %v540
        %v544 = vmul.f32 %v525, %v540
        %v545 = vmul.f32 %v526, %v540
        %v546 = vmul.f32 %v527, %v540
        %v547 = vmul.f32 %v528, %v540
        %v548 = vmul.f32 %v529, %v540
        %v549 = vmul.f32 %v530, %v540
        %v550 = vmul.f32 %v531, %v540
        %v551 = vmul.f32 %v532, %v540
        %v552 = vmul.f32 %v533, %v540
        %v553 = vmul.f32 %v534, %v540
        %v554 = vmul.f32 %v535, %v540
        %v555 = vmul.f32 %v536, %v540
        %v556 = vmul.f32 %v537, %v540
        %v557 = vmul.f32 %v538, %v540
        %v558 = vsel %vm428, %v542, 0.0
        %559 = vadd.xlane.f32.xlu0 %v558
        %v560 = vpop.xlane.xlu0 %559
        %v561 = vsel %vm428, %v543, 0.0
        %562 = vadd.xlane.f32.xlu0 %v561
        %v563 = vpop.xlane.xlu0 %562
        %v564 = vsel %vm428, %v544, 0.0
        %565 = vadd.xlane.f32.xlu0 %v564
        %v566 = vpop.xlane.xlu0 %565
        %v567 = vsel %vm428, %v545, 0.0
        %568 = vadd.xlane.f32.xlu0 %v567
        %v569 = vpop.xlane.xlu0 %568
        %v570 = vsel %vm428, %v546, 0.0
        %571 = vadd.xlane.f32.xlu0 %v570
        %v572 = vpop.xlane.xlu0 %571
        %v573 = vsel %vm428, %v547, 0.0
        %574 = vadd.xlane.f32.xlu0 %v573
        %v575 = vpop.xlane.xlu0 %574
        %v576 = vsel %vm428, %v548, 0.0
        %577 = vadd.xlane.f32.xlu0 %v576
        %v578 = vpop.xlane.xlu0 %577
        %v579 = vsel %vm428, %v549, 0.0
        %580 = vadd.xlane.f32.xlu0 %v579
        %v581 = vpop.xlane.xlu0 %580
        %v582 = vsel %vm428, %v550, 0.0
        %583 = vadd.xlane.f32.xlu0 %v582
        %v584 = vpop.xlane.xlu0 %583
        %v585 = vsel %vm428, %v551, 0.0
        %586 = vadd.xlane.f32.xlu0 %v585
        %v587 = vpop.xlane.xlu0 %586
        %v588 = vsel %vm428, %v552, 0.0
        %589 = vadd.xlane.f32.xlu0 %v588
        %v590 = vpop.xlane.xlu0 %589
        %v591 = vsel %vm428, %v553, 0.0
        %592 = vadd.xlane.f32.xlu0 %v591
        %v593 = vpop.xlane.xlu0 %592
        %v594 = vsel %vm428, %v554, 0.0
        %595 = vadd.xlane.f32.xlu0 %v594
        %v596 = vpop.xlane.xlu0 %595
        %v597 = vsel %vm428, %v555, 0.0
        %598 = vadd.xlane.f32.xlu0 %v597
        %v599 = vpop.xlane.xlu0 %598
        %v600 = vsel %vm428, %v556, 0.0
        %601 = vadd.xlane.f32.xlu0 %v600
        %v602 = vpop.xlane.xlu0 %601
        %v603 = vsel %vm428, %v557, 0.0
        %604 = vadd.xlane.f32.xlu0 %v603
        %v605 = vpop.xlane.xlu0 %604
        %v622 = vlaneseq
        %v623 = vand.u32 %v622, 127
        %v624 = vperm.slane %v560, %v623
        %v625 = vadd.s32 %v623, 4294967288
        %v626 = vperm.slane %v563, %v625
        %vm627 = vcmask 130112
        %v628 = vsel %vm627, %v626, %v624
        %v629 = vperm.slane %v566, %v623
        %v630 = vperm.slane %v569, %v625
        %v631 = vsel %vm627, %v630, %v629
        %v632 = vperm.slane %v572, %v623
        %v633 = vperm.slane %v575, %v625
        %v634 = vsel %vm627, %v633, %v632
        %v635 = vperm.slane %v578, %v623
        %v636 = vperm.slane %v581, %v625
        %v637 = vsel %vm627, %v636, %v635
        %v638 = vperm.slane %v584, %v623
        %v639 = vperm.slane %v587, %v625
        %v640 = vsel %vm627, %v639, %v638
        %v641 = vperm.slane %v590, %v623
        %v642 = vperm.slane %v593, %v625
        %v643 = vsel %vm627, %v642, %v641
        %v644 = vperm.slane %v596, %v623
        %v645 = vperm.slane %v599, %v625
        %v646 = vsel %vm627, %v645, %v644
        %v647 = vperm.slane %v602, %v623
        %v648 = vperm.slane %v605, %v625
        %v649 = vsel %vm627, %v648, %v647
        %vm650 = vcmask 1041409
        %v651 = vsel %vm650, %v631, %v628
        %vm652 = vcmask 1042434
        %v653 = vsel %vm652, %v634, %v651
        %vm654 = vcmask 1043459
        %v655 = vsel %vm654, %v637, %v653
        %vm656 = vcmask 1044484
        %v657 = vsel %vm656, %v640, %v655
        %vm658 = vcmask 1045509
        %v659 = vsel %vm658, %v643, %v657
        %vm660 = vcmask 1046534
        %v661 = vsel %vm660, %v646, %v659
        %vm662 = vcmask 1047559
        %v663 = vsel %vm662, %v649, %v661
        %vm665 = vcmask 130048
        %v666 = vsel %vm665, %v663, -inf
        %667 = vmax.xlane.f32.xlu0 %v666
        %v668 = vpop.xlane.xlu0 %667
        %v670 = vperm.slane %v668, 0
        %v671 = vperm.slane %v668, 1
        %v672 = vperm.slane %v668, 2
        %v673 = vperm.slane %v668, 3
        %v674 = vperm.slane %v668, 4
        %v675 = vperm.slane %v668, 5
        %v676 = vperm.slane %v668, 6
        %v677 = vperm.slane %v668, 7
        %v686 = vsub.f32 %v560, %v670
        %v687 = vsub.f32 %v563, %v670
        %v688 = vsub.f32 %v566, %v671
        %v689 = vsub.f32 %v569, %v671
        %v690 = vsub.f32 %v572, %v672
        %v691 = vsub.f32 %v575, %v672
        %v692 = vsub.f32 %v578, %v673
        %v693 = vsub.f32 %v581, %v673
        %v694 = vsub.f32 %v584, %v674
        %v695 = vsub.f32 %v587, %v674
        %v696 = vsub.f32 %v590, %v675
        %v697 = vsub.f32 %v593, %v675
        %v698 = vsub.f32 %v596, %v676
        %v699 = vsub.f32 %v599, %v676
        %v700 = vsub.f32 %v602, %v677
        %v701 = vsub.f32 %v605, %v677
        %v702 = vmul.f32 %v686, 1.442695
        %v703 = vpow.pop %v702
        %v704 = vmul.f32 %v687, 1.442695
        %v705 = vpow.pop %v704
        %v706 = vmul.f32 %v688, 1.442695
        %v707 = vpow.pop %v706
        %v708 = vmul.f32 %v689, 1.442695
        %v709 = vpow.pop %v708
        %v710 = vmul.f32 %v690, 1.442695
        %v711 = vpow.pop %v710
        %v712 = vmul.f32 %v691, 1.442695
        %v713 = vpow.pop %v712
        %v714 = vmul.f32 %v692, 1.442695
        %v715 = vpow.pop %v714
        %v716 = vmul.f32 %v693, 1.442695
        %v717 = vpow.pop %v716
        %v718 = vmul.f32 %v694, 1.442695
        %v719 = vpow.pop %v718
        %v720 = vmul.f32 %v695, 1.442695
        %v721 = vpow.pop %v720
        %v722 = vmul.f32 %v696, 1.442695
        %v723 = vpow.pop %v722
        %v724 = vmul.f32 %v697, 1.442695
        %v725 = vpow.pop %v724
        %v726 = vmul.f32 %v698, 1.442695
        %v727 = vpow.pop %v726
        %v728 = vmul.f32 %v699, 1.442695
        %v729 = vpow.pop %v728
        %v730 = vmul.f32 %v700, 1.442695
        %v731 = vpow.pop %v730
        %v732 = vmul.f32 %v701, 1.442695
        %v733 = vpow.pop %v732
        %750 = vset.pattern.permute.xlu0 0
        %751 = vperm.xlu0 %750, %v703
        %v752 = vpop.permute.xlu0 %751
        %753 = vset.pattern.permute.xlu0 0
        %754 = vperm.xlu0 %753, %v705
        %v755 = vpop.permute.xlu0 %754
        %756 = vset.pattern.permute.xlu0 0
        %757 = vperm.xlu0 %756, %v707
        %v758 = vpop.permute.xlu0 %757
        %759 = vset.pattern.permute.xlu0 0
        %760 = vperm.xlu0 %759, %v709
        %v761 = vpop.permute.xlu0 %760
        %762 = vset.pattern.permute.xlu0 0
        %763 = vperm.xlu0 %762, %v711
        %v764 = vpop.permute.xlu0 %763
        %765 = vset.pattern.permute.xlu0 0
        %766 = vperm.xlu0 %765, %v713
        %v767 = vpop.permute.xlu0 %766
        %768 = vset.pattern.permute.xlu0 0
        %769 = vperm.xlu0 %768, %v715
        %v770 = vpop.permute.xlu0 %769
        %771 = vset.pattern.permute.xlu0 0
        %772 = vperm.xlu0 %771, %v717
        %v773 = vpop.permute.xlu0 %772
        %774 = vset.pattern.permute.xlu0 0
        %775 = vperm.xlu0 %774, %v719
        %v776 = vpop.permute.xlu0 %775
        %777 = vset.pattern.permute.xlu0 0
        %778 = vperm.xlu0 %777, %v721
        %v779 = vpop.permute.xlu0 %778
        %780 = vset.pattern.permute.xlu0 0
        %781 = vperm.xlu0 %780, %v723
        %v782 = vpop.permute.xlu0 %781
        %783 = vset.pattern.permute.xlu0 0
        %784 = vperm.xlu0 %783, %v725
        %v785 = vpop.permute.xlu0 %784
        %786 = vset.pattern.permute.xlu0 0
        %787 = vperm.xlu0 %786, %v727
        %v788 = vpop.permute.xlu0 %787
        %789 = vset.pattern.permute.xlu0 0
        %790 = vperm.xlu0 %789, %v729
        %v791 = vpop.permute.xlu0 %790
        %792 = vset.pattern.permute.xlu0 0
        %793 = vperm.xlu0 %792, %v731
        %v794 = vpop.permute.xlu0 %793
        %795 = vset.pattern.permute.xlu0 0
        %796 = vperm.xlu0 %795, %v733
        %v797 = vpop.permute.xlu0 %796
        %v798 = vperm.slane %v752, %v623
        %v799 = vperm.slane %v755, %v625
        %v800 = vsel %vm627, %v799, %v798
        %v801 = vperm.slane %v758, %v623
        %v802 = vperm.slane %v761, %v625
        %v803 = vsel %vm627, %v802, %v801
        %v804 = vperm.slane %v764, %v623
        %v805 = vperm.slane %v767, %v625
        %v806 = vsel %vm627, %v805, %v804
        %v807 = vperm.slane %v770, %v623
        %v808 = vperm.slane %v773, %v625
        %v809 = vsel %vm627, %v808, %v807
        %v810 = vperm.slane %v776, %v623
        %v811 = vperm.slane %v779, %v625
        %v812 = vsel %vm627, %v811, %v810
        %v813 = vperm.slane %v782, %v623
        %v814 = vperm.slane %v785, %v625
        %v815 = vsel %vm627, %v814, %v813
        %v816 = vperm.slane %v788, %v623
        %v817 = vperm.slane %v791, %v625
        %v818 = vsel %vm627, %v817, %v816
        %v819 = vperm.slane %v794, %v623
        %v820 = vperm.slane %v797, %v625
        %v821 = vsel %vm627, %v820, %v819
        %v822 = vsel %vm650, %v803, %v800
        %v823 = vsel %vm652, %v806, %v822
        %v824 = vsel %vm654, %v809, %v823
        %v825 = vsel %vm656, %v812, %v824
        %v826 = vsel %vm658, %v815, %v825
        %v827 = vsel %vm660, %v818, %v826
        %v828 = vsel %vm662, %v821, %v827
        %v830 = vsel %vm665, %v828, 0.0
        %831 = vadd.xlane.f32.xlu0 %v830
        %v832 = vpop.xlane.xlu0 %831
        %v833 = vrcp.pop %v832
        %v835 = vperm.slane %v833, 0
        %v836 = vperm.slane %v833, 1
        %v837 = vperm.slane %v833, 2
        %v838 = vperm.slane %v833, 3
        %v839 = vperm.slane %v833, 4
        %v840 = vperm.slane %v833, 5
        %v841 = vperm.slane %v833, 6
        %v842 = vperm.slane %v833, 7
        %v851 = vmul.f32 %v703, %v835
        %v852 = vmul.f32 %v705, %v835
        %v853 = vmul.f32 %v707, %v836
        %v854 = vmul.f32 %v709, %v836
        %v855 = vmul.f32 %v711, %v837
        %v856 = vmul.f32 %v713, %v837
        %v857 = vmul.f32 %v715, %v838
        %v858 = vmul.f32 %v717, %v838
        %v859 = vmul.f32 %v719, %v839
        %v860 = vmul.f32 %v721, %v839
        %v861 = vmul.f32 %v723, %v840
        %v862 = vmul.f32 %v725, %v840
        %v863 = vmul.f32 %v727, %v841
        %v864 = vmul.f32 %v729, %v841
        %v865 = vmul.f32 %v731, %v842
        %v866 = vmul.f32 %v733, %v842
        %883 = vset.pattern.permute.xlu0 0
        %884 = vperm.xlu0 %883, %v851
        %v885 = vpop.permute.xlu0 %884
        %886 = vset.pattern.permute.xlu0 0
        %887 = vperm.xlu0 %886, %v852
        %v888 = vpop.permute.xlu0 %887
        %889 = vset.pattern.permute.xlu0 0
        %890 = vperm.xlu0 %889, %v853
        %v891 = vpop.permute.xlu0 %890
        %892 = vset.pattern.permute.xlu0 0
        %893 = vperm.xlu0 %892, %v854
        %v894 = vpop.permute.xlu0 %893
        %895 = vset.pattern.permute.xlu0 0
        %896 = vperm.xlu0 %895, %v855
        %v897 = vpop.permute.xlu0 %896
        %898 = vset.pattern.permute.xlu0 0
        %899 = vperm.xlu0 %898, %v856
        %v900 = vpop.permute.xlu0 %899
        %901 = vset.pattern.permute.xlu0 0
        %902 = vperm.xlu0 %901, %v857
        %v903 = vpop.permute.xlu0 %902
        %904 = vset.pattern.permute.xlu0 0
        %905 = vperm.xlu0 %904, %v858
        %v906 = vpop.permute.xlu0 %905
        %907 = vset.pattern.permute.xlu0 0
        %908 = vperm.xlu0 %907, %v859
        %v909 = vpop.permute.xlu0 %908
        %910 = vset.pattern.permute.xlu0 0
        %911 = vperm.xlu0 %910, %v860
        %v912 = vpop.permute.xlu0 %911
        %913 = vset.pattern.permute.xlu0 0
        %914 = vperm.xlu0 %913, %v861
        %v915 = vpop.permute.xlu0 %914
        %916 = vset.pattern.permute.xlu0 0
        %917 = vperm.xlu0 %916, %v862
        %v918 = vpop.permute.xlu0 %917
        %919 = vset.pattern.permute.xlu0 0
        %920 = vperm.xlu0 %919, %v863
        %v921 = vpop.permute.xlu0 %920
        %922 = vset.pattern.permute.xlu0 0
        %923 = vperm.xlu0 %922, %v864
        %v924 = vpop.permute.xlu0 %923
        %925 = vset.pattern.permute.xlu0 0
        %926 = vperm.xlu0 %925, %v865
        %v927 = vpop.permute.xlu0 %926
        %928 = vset.pattern.permute.xlu0 0
        %929 = vperm.xlu0 %928, %v866
        %v930 = vpop.permute.xlu0 %929
        %v931 = vperm.slane %v885, %v623
        %v932 = vperm.slane %v888, %v625
        %v933 = vsel %vm627, %v932, %v931
        %v934 = vperm.slane %v891, %v623
        %v935 = vperm.slane %v894, %v625
        %v936 = vsel %vm627, %v935, %v934
        %v937 = vperm.slane %v897, %v623
        %v938 = vperm.slane %v900, %v625
        %v939 = vsel %vm627, %v938, %v937
        %v940 = vperm.slane %v903, %v623
        %v941 = vperm.slane %v906, %v625
        %v942 = vsel %vm627, %v941, %v940
        %v943 = vperm.slane %v909, %v623
        %v944 = vperm.slane %v912, %v625
        %v945 = vsel %vm627, %v944, %v943
        %v946 = vperm.slane %v915, %v623
        %v947 = vperm.slane %v918, %v625
        %v948 = vsel %vm627, %v947, %v946
        %v949 = vperm.slane %v921, %v623
        %v950 = vperm.slane %v924, %v625
        %v951 = vsel %vm627, %v950, %v949
        %v952 = vperm.slane %v927, %v623
        %v953 = vperm.slane %v930, %v625
        %v954 = vsel %vm627, %v953, %v952
        %v955 = vsel %vm650, %v936, %v933
        %v956 = vsel %vm652, %v939, %v955
        %v957 = vsel %vm654, %v942, %v956
        %v958 = vsel %vm656, %v945, %v957
        %v959 = vsel %vm658, %v948, %v958
        %v960 = vsel %vm660, %v951, %v959
        %v961 = vsel %vm662, %v954, %v960
        %v962 = vsel %vm665, %v961, 0
        %964 = vmatpush.msra.mxu0 0.0
        %965 = vmatpush.msra.mxu0 0.0
        %966 = vmatpush.msra.mxu0 0.0
        %967 = vmatpush.msra.mxu0 0.0
        %968 = vmatpush.msra.mxu0 0.0
        %969 = vmatpush.msra.mxu0 0.0
        %970 = vmatpush.msra.mxu0 0.0
        %971 = vmatpush.msra.mxu0 0.0
        %972 = vmatpush.msra.mxu0 0.0
        %973 = vmatpush.msra.mxu0 0.0
        %974 = vmatpush.msra.mxu0 0.0
        %975 = vmatpush.msra.mxu0 0.0
        %976 = vmatpush.msra.mxu0 0.0
        %977 = vmatpush.msra.mxu0 0.0
        %978 = vmatpush.msra.mxu0 %v415
        %979 = vmatpush.msra.mxu0 %v414
        %980 = vmatmul.f32.gmra.mxu0 %v962
        %v981 = vpop.f32.mrf.mxu0
        %v982 = vadd.f32 0.0, %v981
        %983 = vdwg.mxu0
        %v984 = vrot.slane %v663, 4
        %vm985 = vcmask 1047556
        %v986 = vsel %vm985, 0.0, %v984
        %v988 = vunpack.c.l.s4 1983009808
        %v989 = vunpack.c.0.s8 %v988
        %v990 = vperm.slane %v663, %v989
        %v992 = vunpack.c.l.s4 1983009808
        %v993 = vunpack.c.0.s8 %v992
        %v994 = vperm.slane %v986, %v993
        %v995 = vrot.slane %v990, 4
        %v996 = vsel %vm985, 0.0, %v995
        %v998 = vunpack.c.l.s4 1934713408
        %v999 = vunpack.c.0.s8 %v998
        %v1000 = vperm.slane %v990, %v999
        %v1002 = vunpack.c.l.s4 1934713408
        %v1003 = vunpack.c.0.s8 %v1002
        %v1004 = vperm.slane %v996, %v1003
        %v1005 = vrot.slane %v994, 4
        %v1006 = vsel %vm985, 0.0, %v1005
        %v1008 = vunpack.c.l.s4 1934713408
        %v1009 = vunpack.c.0.s8 %v1008
        %v1010 = vperm.slane %v994, %v1009
        %v1012 = vunpack.c.l.s4 1934713408
        %v1013 = vunpack.c.0.s8 %v1012
        %v1014 = vperm.slane %v1006, %v1013
        %v1015 = vrot.slane %v1000, 4
        %v1016 = vsel %vm985, 0.0, %v1015
        %v1017 = vrot.slane %v1004, 4
        %v1018 = vsel %vm985, 0.0, %v1017
        %v1019 = vrot.slane %v1010, 4
        %v1020 = vsel %vm985, 0.0, %v1019
        %v1021 = vrot.slane %v1014, 4
        %v1022 = vsel %vm985, 0.0, %v1021
        %1024 = vrot.lane.b32.xlu0 %v1016, 16
        %v1025 = vpop.permute.xlu0 %1024
        %1028 = vrot.lane.b32.xlu0 %v1004, 32
        %v1029 = vpop.permute.xlu0 %1028
        %1032 = vrot.lane.b32.xlu0 %v1018, 48
        %v1033 = vpop.permute.xlu0 %1032
        %1036 = vrot.lane.b32.xlu0 %v1010, 64
        %v1037 = vpop.permute.xlu0 %1036
        %1040 = vrot.lane.b32.xlu0 %v1020, 80
        %v1041 = vpop.permute.xlu0 %1040
        %1044 = vrot.lane.b32.xlu0 %v1014, 96
        %v1045 = vpop.permute.xlu0 %1044
        %1048 = vrot.lane.b32.xlu0 %v1022, 112
        %v1049 = vpop.permute.xlu0 %1048
        %v1051 = vsel %vm665, %v1000, %v1025
        %v1052 = vsel %vm428, %v1051, %v1029
        %vm1053 = vcmask 392192
        %v1054 = vsel %vm1053, %v1052, %v1033
        %vm1055 = vcmask 523264
        %v1056 = vsel %vm1055, %v1054, %v1037
        %vm1057 = vcmask 654336
        %v1058 = vsel %vm1057, %v1056, %v1041
        %vm1059 = vcmask 785408
        %v1060 = vsel %vm1059, %v1058, %v1045
        %vm1061 = vcmask 916480
        %v1062 = vsel %vm1061, %v1060, %v1049
        %1063 = vst [vmem:[%s413] sm:$0x1] %v1062
        %v1065 = vrot.slane %v961, 4
        %v1066 = vsel %vm985, 0.0, %v1065
        %v1068 = vunpack.c.l.s4 1983009808
        %v1069 = vunpack.c.0.s8 %v1068
        %v1070 = vperm.slane %v961, %v1069
        %v1072 = vunpack.c.l.s4 1983009808
        %v1073 = vunpack.c.0.s8 %v1072
        %v1074 = vperm.slane %v1066, %v1073
        %v1075 = vrot.slane %v1070, 4
        %v1076 = vsel %vm985, 0.0, %v1075
        %v1078 = vunpack.c.l.s4 1934713408
        %v1079 = vunpack.c.0.s8 %v1078
        %v1080 = vperm.slane %v1070, %v1079
        %v1082 = vunpack.c.l.s4 1934713408
        %v1083 = vunpack.c.0.s8 %v1082
        %v1084 = vperm.slane %v1076, %v1083
        %v1085 = vrot.slane %v1074, 4
        %v1086 = vsel %vm985, 0.0, %v1085
        %v1088 = vunpack.c.l.s4 1934713408
        %v1089 = vunpack.c.0.s8 %v1088
        %v1090 = vperm.slane %v1074, %v1089
        %v1092 = vunpack.c.l.s4 1934713408
        %v1093 = vunpack.c.0.s8 %v1092
        %v1094 = vperm.slane %v1086, %v1093
        %v1095 = vrot.slane %v1080, 4
        %v1096 = vsel %vm985, 0.0, %v1095
        %v1097 = vrot.slane %v1084, 4
        %v1098 = vsel %vm985, 0.0, %v1097
        %v1099 = vrot.slane %v1090, 4
        %v1100 = vsel %vm985, 0.0, %v1099
        %v1101 = vrot.slane %v1094, 4
        %v1102 = vsel %vm985, 0.0, %v1101
        %1104 = vrot.lane.b32.xlu0 %v1096, 16
        %v1105 = vpop.permute.xlu0 %1104
        %1108 = vrot.lane.b32.xlu0 %v1084, 32
        %v1109 = vpop.permute.xlu0 %1108
        %1112 = vrot.lane.b32.xlu0 %v1098, 48
        %v1113 = vpop.permute.xlu0 %1112
        %1116 = vrot.lane.b32.xlu0 %v1090, 64
        %v1117 = vpop.permute.xlu0 %1116
        %1120 = vrot.lane.b32.xlu0 %v1100, 80
        %v1121 = vpop.permute.xlu0 %1120
        %1124 = vrot.lane.b32.xlu0 %v1094, 96
        %v1125 = vpop.permute.xlu0 %1124
        %1128 = vrot.lane.b32.xlu0 %v1102, 112
        %v1129 = vpop.permute.xlu0 %1128
        %v1131 = vsel %vm665, %v1080, %v1105
        %v1132 = vsel %vm428, %v1131, %v1109
        %v1133 = vsel %vm1053, %v1132, %v1113
        %v1134 = vsel %vm1055, %v1133, %v1117
        %v1135 = vsel %vm1057, %v1134, %v1121
        %v1136 = vsel %vm1059, %v1135, %v1125
        %v1137 = vsel %vm1061, %v1136, %v1129
        %1138 = vst [vmem:[%s407] sm:$0x1] %v1137
        %v1139 = vrot.slane %v982, 4
        %v1140 = vsel %vm985, 0.0, %v1139
        %v1142 = vunpack.c.l.s4 1983009808
        %v1143 = vunpack.c.0.s8 %v1142
        %v1144 = vperm.slane %v982, %v1143
        %v1146 = vunpack.c.l.s4 1983009808
        %v1147 = vunpack.c.0.s8 %v1146
        %v1148 = vperm.slane %v1140, %v1147
        %v1149 = vrot.slane %v1144, 4
        %v1150 = vsel %vm985, 0.0, %v1149
        %v1152 = vunpack.c.l.s4 1934713408
        %v1153 = vunpack.c.0.s8 %v1152
        %v1154 = vperm.slane %v1144, %v1153
        %v1156 = vunpack.c.l.s4 1934713408
        %v1157 = vunpack.c.0.s8 %v1156
        %v1158 = vperm.slane %v1150, %v1157
        %v1159 = vrot.slane %v1148, 4
        %v1160 = vsel %vm985, 0.0, %v1159
        %v1162 = vunpack.c.l.s4 1934713408
        %v1163 = vunpack.c.0.s8 %v1162
        %v1164 = vperm.slane %v1148, %v1163
        %v1166 = vunpack.c.l.s4 1934713408
        %v1167 = vunpack.c.0.s8 %v1166
        %v1168 = vperm.slane %v1160, %v1167
        %v1169 = vrot.slane %v1154, 4
        %v1170 = vsel %vm985, 0.0, %v1169
        %v1171 = vrot.slane %v1158, 4
        %v1172 = vsel %vm985, 0.0, %v1171
        %v1173 = vrot.slane %v1164, 4
        %v1174 = vsel %vm985, 0.0, %v1173
        %v1175 = vrot.slane %v1168, 4
        %v1176 = vsel %vm985, 0.0, %v1175
        %1178 = vrot.lane.b32.xlu0 %v1170, 32
        %v1179 = vpop.permute.xlu0 %1178
        %1182 = vrot.lane.b32.xlu0 %v1158, 64
        %v1183 = vpop.permute.xlu0 %1182
        %1186 = vrot.lane.b32.xlu0 %v1172, 96
        %v1187 = vpop.permute.xlu0 %1186
        %1190 = vrot.lane.b32.xlu0 %v1174, 32
        %v1191 = vpop.permute.xlu0 %1190
        %1194 = vrot.lane.b32.xlu0 %v1168, 64
        %v1195 = vpop.permute.xlu0 %1194
        %1198 = vrot.lane.b32.xlu0 %v1176, 96
        %v1199 = vpop.permute.xlu0 %1198
        %v1201 = vsel %vm428, %v1154, %v1179
        %v1202 = vsel %vm1055, %v1201, %v1183
        %v1203 = vsel %vm1059, %v1202, %v1187
        %v1204 = vsel %vm428, %v1164, %v1191
        %v1205 = vsel %vm1055, %v1204, %v1195
        %v1206 = vsel %vm1059, %v1205, %v1199
        %v1209 = vrot.slane %v1206, 7
        %vm1210 = vcmask 1040384
        %v1211 = vsel %vm1210, %v1203, %v1209
        %v1213 = vlaneseq
        %vm1214 = vcmp.ge.s32.totalorder %v1213, 0
        %vm1215 = vcmp.lt.s32.totalorder %v1213, 256
        %vm1216 = vmand %vm1214, %vm1215
        %1217 = vst.msk [vmem:[%s401] sm:$0x3] %vm1216, %v1211
        %s1218 = sand.u32 %s177, 1
        %s1219 = scalar_lea.sflag [#allocation4], %s1218
        %s1220 = sand.u32 %s177, 1
        %s1221 = smul.addr %s1220, 2
        %s1222 = scalar_lea.vmem [#allocation10], %s1221
        %s1223 = sand.u32 %s33, 1
        %s1224 = scalar_lea.sflag [#allocation12], %s1223
        %s1225 = sand.u32 %s203, 1
        %s1226 = scalar_lea.vmem [#allocation11], %s1225
        %s1227 = sand.u32 %s33, 1
        %s1228 = scalar_lea.sflag [#allocation12], %s1227
        %s1229 = sand.u32 %s229, 1
        %s1230 = scalar_lea.vmem [#allocation13], %s1229
        // Predicated region
        $region61: #{tpu_custom_call.1} parent=43 // pred_check
          %p1231 = pneg %p187
        $region62: #{tpu_custom_call.1} parent=43 // pred_check_branch
          %1233 = sbr.rel (%p1231) target = $region64
        $region63: #{tpu_custom_call.1} parent=43 // pred_region
          %1235 = vsyncadd %s1219, 0
          %s1236 = smul.addr %s33, 2
          %s1237 = scalar_lea.hbm %s6, %s1236
          %s1239 = sshll.u32 %s1222, 4
          %s1240 = int_to_ptr.vmem [resolvable:$true] %s1239
          %s1241 = sshll.u32 %s1237, 4
          %s1242 = int_to_ptr.hbm [resolvable:$true] %s1241
          %1244 = dma.vmem_to_hbm [thread:$0]  %s1240, 32, %s1242, %s1219
        $region64: #{tpu_custom_call.1} parent=43 // pred_fallthru
          _
        // Predicated region
        $region65: #{tpu_custom_call.1} parent=43 // pred_check
          %p1245 = pneg %p213
        $region66: #{tpu_custom_call.1} parent=43 // pred_check_branch
          %1247 = sbr.rel (%p1245) target = $region68
        $region67: #{tpu_custom_call.1} parent=43 // pred_region
          %1249 = vsyncadd %s1224, 0
          %s1250 = scalar_lea.hbm %s7, %s33
          %s1252 = sshll.u32 %s1226, 4
          %s1253 = int_to_ptr.vmem [resolvable:$true] %s1252
          %s1254 = sshll.u32 %s1250, 4
          %s1255 = int_to_ptr.hbm [resolvable:$true] %s1254
          %1257 = dma.vmem_to_hbm [thread:$0]  %s1253, 16, %s1255, %s1224
        $region68: #{tpu_custom_call.1} parent=43 // pred_fallthru
          _
        // Predicated region
        $region69: #{tpu_custom_call.1} parent=43 // pred_check
          %p1258 = pneg %p239
        $region70: #{tpu_custom_call.1} parent=43 // pred_check_branch
          %1260 = sbr.rel (%p1258) target = $region72
        $region71: #{tpu_custom_call.1} parent=43 // pred_region
          %1262 = vsyncadd %s1228, 0
          %s1263 = scalar_lea.hbm %s8, %s33
          %s1265 = sshll.u32 %s1230, 4
          %s1266 = int_to_ptr.vmem [resolvable:$true] %s1265
          %s1267 = sshll.u32 %s1263, 4
          %s1268 = int_to_ptr.hbm [resolvable:$true] %s1267
          %1270 = dma.vmem_to_hbm [thread:$0]  %s1266, 16, %s1268, %s1228
        $region72: #{tpu_custom_call.1} parent=43 // pred_fallthru
          _
      $region44: #{tpu_custom_call.1} parent=5 // pred_fallthru
        _
      %p1271 = scmp.le.s32.totalorder 2, %s28
      // Predicated region
      $region73: #{tpu_custom_call.1} parent=5 // pred_check
        %p1272 = pneg %p1271
      $region74: #{tpu_custom_call.1} parent=5 // pred_check_branch
        %1274 = sbr.rel (%p1272) target = $region76
      $region75: #{tpu_custom_call.1} parent=5 // pred_region
        %s1275 = ssub.s32 %s28, 2
        // Predicated region
        $region77: #{tpu_custom_call.1} parent=75 // pred_check
          %p1276 = pneg %p193
        $region78: #{tpu_custom_call.1} parent=75 // pred_check_branch
          %1278 = sbr.rel (%p1276) target = $region80
        $region79: #{tpu_custom_call.1} parent=75 // pred_region
          %s1279 = sand.u32 %s178, 1
          %s1280 = scalar_lea.sflag [#allocation4], %s1279
          %s1281 = sand.u32 %s178, 1
          %s1282 = smul.addr %s1281, 2
          %s1283 = scalar_lea.vmem [#allocation10], %s1282
          %1285 = dma.done %s1280, 32
        $region80: #{tpu_custom_call.1} parent=75 // pred_fallthru
          _
        // Predicated region
        $region81: #{tpu_custom_call.1} parent=75 // pred_check
          %p1286 = pneg %p219
        $region82: #{tpu_custom_call.1} parent=75 // pred_check_branch
          %1288 = sbr.rel (%p1286) target = $region84
        $region83: #{tpu_custom_call.1} parent=75 // pred_region
          %s1289 = sand.u32 %s34, 1
          %s1290 = scalar_lea.sflag [#allocation12], %s1289
          %s1291 = sand.u32 %s204, 1
          %s1292 = scalar_lea.vmem [#allocation11], %s1291
          %1294 = dma.done %s1290, 16
        $region84: #{tpu_custom_call.1} parent=75 // pred_fallthru
          _
        // Predicated region
        $region85: #{tpu_custom_call.1} parent=75 // pred_check
          %p1295 = pneg %p245
        $region86: #{tpu_custom_call.1} parent=75 // pred_check_branch
          %1297 = sbr.rel (%p1295) target = $region88
        $region87: #{tpu_custom_call.1} parent=75 // pred_region
          %s1298 = sand.u32 %s34, 1
          %s1299 = scalar_lea.sflag [#allocation12], %s1298
          %s1300 = sand.u32 %s230, 1
          %s1301 = scalar_lea.vmem [#allocation13], %s1300
          %1303 = dma.done %s1299, 16
        $region88: #{tpu_custom_call.1} parent=75 // pred_fallthru
          _
      $region76: #{tpu_custom_call.1} parent=5 // pred_fallthru
        _
    $region6: #{tpu_custom_call.1} parent=1 // loop_footer
      %s32 = sadd.s32 1, %s28
    $region7: #{tpu_custom_call.1} parent=1 // loop_footer_branch
      %27 = sbr.rel target = $region3
    $region8: #{tpu_custom_call.1} parent=1 // loop_exit
      _
    %1304 = vsyncpa [#allocation3], 1
    %s1305 = scalar_lea.sflag [#allocation3], 1
    %1306 = vsyncpa %s1305, 1
    %1307 = vsyncpa [#allocation6], 1
    %s1308 = scalar_lea.sflag [#allocation6], 1
    %1309 = vsyncpa %s1308, 1
    %1310 = vsyncpa [#allocation9], 1
    %1311 = vsyncpa [#allocation4], 1
    %s1312 = scalar_lea.sflag [#allocation4], 1
    %1313 = vsyncpa %s1312, 1
    %1314 = vsyncpa [#allocation12], 1
    %s1315 = scalar_lea.sflag [#allocation12], 1
    %1316 = vsyncpa %s1315, 1

</llo_original>
